<compile_context>
chip_gen: v7x
topology: tpu7x:2x2x1
jax: 0.10.0
libtpu: 0.0.40
codegen_flags: <defaults>
</compile_context>

<pallas_src>
import jax
import jax.numpy as jnp
from jax.experimental import pallas as pl
from jax.experimental.pallas import tpu as pltpu

_LANE = 128
_SUBLANE = 8
_TM_MAX = 256  # keeps grid(0) >= 2 for B >= 512 (v7x megacore), MXU-friendly


def _round_up(x, m):
    return (x + m - 1) // m * m


def _pad2d(a, rows, cols, dtype):
    a = a.astype(dtype)
    pr, pc = rows - a.shape[0], cols - a.shape[1]
    if pr or pc:
        a = jnp.pad(a, ((0, pr), (0, pc)))
    return a


def _vmem_capacity_bytes():
    try:
        return int(pltpu.get_tpu_info().vmem_capacity_bytes)
    except Exception:
        return 64 * 1024 * 1024  # conservative (v7x per-TC VMEM)


# ----------------------------- kernels --------------------------------------
def _mlp_kernel_resident(x_ref, w1_ref, b1_ref, w2_ref, b2_ref, o_ref):
    # Fully fused fc1 -> dropout(eval=identity) -> fc2; weights VMEM-resident.
    h = jnp.dot(x_ref[...], w1_ref[...],
                preferred_element_type=jnp.float32) + b1_ref[...]
    # TODO(synk): nn.Dropout is identity in eval mode; training-mode masking
    # (pltpu.prng_seed + prng_random_bits + 1/(1-p) scaling) intentionally omitted.
    o_ref[...] = (jnp.dot(h.astype(w2_ref.dtype), w2_ref[...],
                          preferred_element_type=jnp.float32)
                  + b2_ref[...]).astype(o_ref.dtype)


def _mlp_kernel_streamed(x_ref, w1_ref, b1_ref, w2_ref, b2_ref, o_ref, acc_ref):
    # fc1 reduction tiled along grid axis 1; f32 accumulator resident across k.
    k = pl.program_id(1)
    partial = jnp.dot(x_ref[...], w1_ref[...], preferred_element_type=jnp.float32)

    @pl.when(k == 0)
    def _():
        # First k-step WRITES (fc1 bias folded in): no zero-init pass, no extra
        # accumulator store+reload.
        acc_ref[...] = partial + b1_ref[...]

    @pl.when(k > 0)
    def _():
        acc_ref[...] += partial

    @pl.when(k == pl.num_programs(1) - 1)
    def _():
        h = acc_ref[...]
        # TODO(synk): eval-mode dropout = identity (see resident kernel).
        o_ref[...] = (jnp.dot(h.astype(w2_ref.dtype), w2_ref[...],
                              preferred_element_type=jnp.float32)
                      + b2_ref[...]).astype(o_ref.dtype)


# --------------------------- wrapper / sizing --------------------------------
def prepare_params(params, _force_stream_tk=None):
    """One-time packing of MLP weights into kernel layout (padded, bf16).

    Call once at model-load; reuse across forward calls so padding/casting HBM
    traffic is not paid every step.
    """
    emb = params["embedding"]
    w1, b1 = params["w1"], params["b1"]
    w2, b2 = params["w2"], params["b2"]

    in_dim, hidden = w1.shape
    classes = w2.shape[1]
    H_pad = _round_up(hidden, _LANE)
    C_pad = _round_up(classes, _LANE)

    budget = (_vmem_capacity_bytes() * 3) // 4  # leave pipeline headroom

    def _resident_need(tm, kp):
        return (2 * tm * kp * 2 + 2 * kp * H_pad * 2
                + 2 * H_pad * C_pad * 2 + 2 * (H_pad + C_pad) * 4
                + 2 * tm * C_pad * 4)

    def _stream_need(tm, tk):
        return (2 * tm * tk * 2 + 2 * tk * H_pad * 2
                + 2 * H_pad * C_pad * 2 + 2 * (H_pad + C_pad) * 4
                + tm * H_pad * 4 + 2 * tm * C_pad * 4)

    K_min = _round_up(in_dim, _LANE)
    if _force_stream_tk is None and _resident_need(_TM_MAX, K_min) <= budget:
        mode, TM, TK, K_pad = "resident", _TM_MAX, K_min, K_min
    else:
        mode = "streamed"
        TM, TK = _SUBLANE, _LANE  # fallback if nothing fits the budget
        found = False
        for tm in (256, 128, 64, 32, 16, 8):
            for tk in (512, 256, 128):
                if _force_stream_tk is not None and tk != _force_stream_tk:
                    continue
                if _stream_need(tm, tk) <= budget:
                    TM, TK, found = tm, tk, True
                    break
            if found:
                break
        K_pad = _round_up(in_dim, TK)

    return {
        "emb": emb.astype(jnp.bfloat16),                      # bf16 gather source
        "w1": _pad2d(w1, K_pad, H_pad, jnp.bfloat16),
        "b1": _pad2d(b1.reshape(1, -1), 1, H_pad, jnp.float32),
        "w2": _pad2d(w2, H_pad, C_pad, jnp.bfloat16),
        "b2": _pad2d(b2.reshape(1, -1), 1, C_pad, jnp.float32),
        # static sizing (python ints)
        "mode": mode, "TM": TM, "TK": TK,
        "in_dim": in_dim, "hidden": hidden, "classes": classes,
        "K_pad": K_pad, "H_pad": H_pad, "C_pad": C_pad,
        "vmem_limit": int(budget),
    }


def mlp_forward(token_ids, lengths, prepared):
    """Forward matching MLP.forward(x, lengths).

    token_ids: [B, fix_length] int32; lengths unused by the reference forward.
    `prepared` is the output of prepare_params().
    """
    del lengths  # the PyTorch forward never uses `lengths`
    B = token_ids.shape[0]
    in_dim = prepared["in_dim"]
    K_pad, H_pad, C_pad = prepared["K_pad"], prepared["H_pad"], prepared["C_pad"]
    classes = prepared["classes"]

    # TODO(synk): the embedding gather is still done by XLA (one bf16 HBM pass);
    # fusing it via scalar-prefetched token ids + manual DMA gather would save it.
    x_flat = jnp.take(prepared["emb"], token_ids, axis=0).reshape(B, -1)  # bf16

    TM = min(prepared["TM"], _round_up(B, _SUBLANE))
    B_pad = _round_up(B, TM)
    if B_pad != B or K_pad != in_dim:
        x_flat = jnp.pad(x_flat, ((0, B_pad - B), (0, K_pad - in_dim)))

    nb = B_pad // TM
    w1, b1, w2, b2 = prepared["w1"], prepared["b1"], prepared["w2"], prepared["b2"]

    if prepared["mode"] == "resident":
        grid_spec = pltpu.PrefetchScalarGridSpec(
            num_scalar_prefetch=0,
            grid=(nb,),
            in_specs=[
                pl.BlockSpec((TM, K_pad), lambda i: (i, 0)),       # x tile
                pl.BlockSpec((K_pad, H_pad), lambda i: (0, 0)),    # w1 resident
                pl.BlockSpec((1, H_pad), lambda i: (0, 0)),        # b1 resident
                pl.BlockSpec((H_pad, C_pad), lambda i: (0, 0)),    # w2 resident
                pl.BlockSpec((1, C_pad), lambda i: (0, 0)),        # b2 resident
            ],
            out_specs=pl.BlockSpec((TM, C_pad), lambda i: (i, 0)),
        )
        kernel = _mlp_kernel_resident
        dim_sem = ("parallel",)
        w1_passes = 1
    else:
        TK = prepared["TK"]
        nk = K_pad // TK
        grid_spec = pltpu.PrefetchScalarGridSpec(
            num_scalar_prefetch=0,
            grid=(nb, nk),
            in_specs=[
                pl.BlockSpec((TM, TK), lambda i, k: (i, k)),        # x tile
                pl.BlockSpec((TK, H_pad), lambda i, k: (k, 0)),     # w1 tile
                pl.BlockSpec((1, H_pad), lambda i, k: (0, 0)),      # b1 resident
                pl.BlockSpec((H_pad, C_pad), lambda i, k: (0, 0)),  # w2 resident
                pl.BlockSpec((1, C_pad), lambda i, k: (0, 0)),      # b2 resident
            ],
            out_specs=pl.BlockSpec((TM, C_pad), lambda i, k: (i, 0)),
            scratch_shapes=[pltpu.VMEM((TM, H_pad), jnp.float32)],
        )
        kernel = _mlp_kernel_streamed
        dim_sem = ("parallel", "arbitrary")
        w1_passes = nb  # w1's block index resets every batch tile -> re-streamed

    cost = pl.CostEstimate(
        flops=2 * B_pad * K_pad * H_pad + 2 * B_pad * H_pad * C_pad,
        transcendentals=0,
        bytes_accessed=(B_pad * K_pad * 2
                        + w1_passes * K_pad * H_pad * 2
                        + H_pad * C_pad * 2 + (H_pad + C_pad) * 4
                        + B_pad * C_pad * 4),
    )

    out_pad = pl.pallas_call(
        kernel,
        out_shape=jax.ShapeDtypeStruct((B_pad, C_pad), jnp.float32),
        grid_spec=grid_spec,
        compiler_params=pltpu.CompilerParams(
            dimension_semantics=dim_sem,
            vmem_limit_bytes=prepared["vmem_limit"],
        ),
        cost_estimate=cost,
    )(x_flat, w1, b1, w2, b2)

    return out_pad[:B, :classes]


def init_params(key, vocabulary_size, vector_dim, fix_length, hidden_dim, class_num):
    k_emb, k_w1, k_b1, k_w2, k_b2 = jax.random.split(key, 5)
    in_dim = fix_length * vector_dim
    return {
        "embedding": jax.random.normal(k_emb, (vocabulary_size, vector_dim),
                                       dtype=jnp.float32),
        "w1": jax.random.uniform(k_w1, (in_dim, hidden_dim), jnp.float32,
                                 -1.0 / jnp.sqrt(in_dim), 1.0 / jnp.sqrt(in_dim)),
        "b1": jax.random.uniform(k_b1, (hidden_dim,), jnp.float32,
                                 -1.0 / jnp.sqrt(in_dim), 1.0 / jnp.sqrt(in_dim)),
        "w2": jax.random.uniform(k_w2, (hidden_dim, class_num), jnp.float32,
                                 -1.0 / jnp.sqrt(hidden_dim), 1.0 / jnp.sqrt(hidden_dim)),
        "b2": jax.random.uniform(k_b2, (class_num,), jnp.float32,
                                 -1.0 / jnp.sqrt(hidden_dim), 1.0 / jnp.sqrt(hidden_dim)),
    }


def _reference(p, toks):
    # Same bf16-operand / f32-accumulation numerics as the kernel.
    xq = jnp.take(p["embedding"].astype(jnp.bfloat16), toks,
                  axis=0).reshape(toks.shape[0], -1).astype(jnp.float32)
    w1b = p["w1"].astype(jnp.bfloat16).astype(jnp.float32)
    w2b = p["w2"].astype(jnp.bfloat16).astype(jnp.float32)
    h = jnp.dot(xq, w1b, precision=jax.lax.Precision.HIGHEST) + p["b1"]
    hb = h.astype(jnp.bfloat16).astype(jnp.float32)
    return jnp.dot(hb, w2b, precision=jax.lax.Precision.HIGHEST) + p["b2"]


if __name__ == "__main__":
    # Small config consistent with the module's __init__.
    config = dict(vector_dim=16, class_num=4, vocabulary_size=100,
                  fix_length=8, hidden_dim=32)
    key = jax.random.PRNGKey(0)
    k_params, k_tok = jax.random.split(key)

    params = init_params(k_params, config["vocabulary_size"], config["vector_dim"],
                         config["fix_length"], config["hidden_dim"],
                         config["class_num"])
    prepared = prepare_params(params)          # one-time pad/cast; resident path
    assert prepared["mode"] == "resident"

    batch = 2
    token_ids = jax.random.randint(k_tok, (batch, config["fix_length"]), 0,
                                   config["vocabulary_size"], dtype=jnp.int32)
    lengths = jnp.full((batch,), config["fix_length"], dtype=jnp.int32)

    logits = mlp_forward(token_ids, lengths, prepared)
    jax.block_until_ready(logits)
    assert logits.shape == (batch, config["class_num"])
    assert jnp.allclose(logits, _reference(params, token_ids), atol=1e-2, rtol=1e-2)

    # Also exercise the streamed (K-tiled) kernel variant on small shapes:
    # fix_length=32 -> in_dim=512 -> 4 K-tiles at forced TK=128.
    config2 = dict(vector_dim=16, class_num=4, vocabulary_size=100,
                   fix_length=32, hidden_dim=32)
    k_p2, k_t2 = jax.random.split(jax.random.PRNGKey(1))
    params2 = init_params(k_p2, config2["vocabulary_size"], config2["vector_dim"],
                          config2["fix_length"], config2["hidden_dim"],
                          config2["class_num"])
    prepared2 = prepare_params(params2, _force_stream_tk=128)
    assert prepared2["mode"] == "streamed"
    tok2 = jax.random.randint(k_t2, (batch, config2["fix_length"]), 0,
                              config2["vocabulary_size"], dtype=jnp.int32)
    len2 = jnp.full((batch,), config2["fix_length"], dtype=jnp.int32)
    logits2 = mlp_forward(tok2, len2, prepared2)
    jax.block_until_ready(logits2)
    assert logits2.shape == (batch, config2["class_num"])
    assert jnp.allclose(logits2, _reference(params2, tok2), atol=1e-2, rtol=1e-2)

    print("KERNEL_OK")
</pallas_src>

<mosaic_0001>
module attributes {stable_mosaic.version = 11 : i64} {
  func.func @_mlp_kernel_resident(%arg0: i32, %arg1: memref<8x128xbf16, #tpu.memory_space<vmem>>, %arg2: memref<128x128xbf16, #tpu.memory_space<vmem>>, %arg3: memref<1x128xf32, #tpu.memory_space<vmem>>, %arg4: memref<128x128xbf16, #tpu.memory_space<vmem>>, %arg5: memref<1x128xf32, #tpu.memory_space<vmem>>, %arg6: memref<8x128xf32, #tpu.memory_space<vmem>>) attributes {dimension_semantics = [#tpu.dimension_semantics<parallel>], iteration_bounds = array<i64: 1>, scalar_prefetch = 0 : i64, scratch_operands = 0 : i64, tpu.core_type = #tpu.core_type<tc>, window_params = [{transform_indices = @transform_0, window_bounds = array<i64: 8, 128>}, {pipeline_mode = #tpu.pipeline_mode<synchronous>, transform_indices = @transform_1, window_bounds = array<i64: 128, 128>}, {pipeline_mode = #tpu.pipeline_mode<synchronous>, transform_indices = @transform_2, window_bounds = array<i64: 1, 128>}, {pipeline_mode = #tpu.pipeline_mode<synchronous>, transform_indices = @transform_3, window_bounds = array<i64: 128, 128>}, {pipeline_mode = #tpu.pipeline_mode<synchronous>, transform_indices = @transform_4, window_bounds = array<i64: 1, 128>}, {transform_indices = @transform_5, window_bounds = array<i64: 8, 128>}]} {
    %c0 = arith.constant 0 : index
    %c0_0 = arith.constant 0 : index
    %0 = vector.load %arg1[%c0, %c0_0] : memref<8x128xbf16, #tpu.memory_space<vmem>>, vector<8x128xbf16>
    %c0_1 = arith.constant 0 : index
    %c0_2 = arith.constant 0 : index
    %1 = vector.load %arg2[%c0_1, %c0_2] : memref<128x128xbf16, #tpu.memory_space<vmem>>, vector<128x128xbf16>
    %cst = arith.constant dense<0.000000e+00> : vector<8x128xf32>
    %2 = tpu.matmul %0, %1, %cst {dimension_numbers = #tpu.dot_dimension_numbers<[1], [0], [0], [1], [0, 0, 1, 1], [], []>} : vector<8x128xbf16>, vector<128x128xbf16>, vector<8x128xf32> -> vector<8x128xf32>
    %c0_3 = arith.constant 0 : index
    %c0_4 = arith.constant 0 : index
    %3 = vector.load %arg3[%c0_3, %c0_4] : memref<1x128xf32, #tpu.memory_space<vmem>>, vector<1x128xf32>
    %4 = vector.broadcast %3 : vector<1x128xf32> to vector<8x128xf32>
    %5 = arith.addf %2, %4 : vector<8x128xf32>
    %6 = arith.truncf %5 : vector<8x128xf32> to vector<8x128xbf16>
    %c0_5 = arith.constant 0 : index
    %c0_6 = arith.constant 0 : index
    %7 = vector.load %arg4[%c0_5, %c0_6] : memref<128x128xbf16, #tpu.memory_space<vmem>>, vector<128x128xbf16>
    %cst_7 = arith.constant dense<0.000000e+00> : vector<8x128xf32>
    %8 = tpu.matmul %6, %7, %cst_7 {dimension_numbers = #tpu.dot_dimension_numbers<[1], [0], [0], [1], [0, 0, 1, 1], [], []>} : vector<8x128xbf16>, vector<128x128xbf16>, vector<8x128xf32> -> vector<8x128xf32>
    %c0_8 = arith.constant 0 : index
    %c0_9 = arith.constant 0 : index
    %9 = vector.load %arg5[%c0_8, %c0_9] : memref<1x128xf32, #tpu.memory_space<vmem>>, vector<1x128xf32>
    %10 = vector.broadcast %9 : vector<1x128xf32> to vector<8x128xf32>
    %11 = arith.addf %8, %10 : vector<8x128xf32>
    %c0_10 = arith.constant 0 : index
    %c0_11 = arith.constant 0 : index
    %12 = vector.load %arg6[%c0_10, %c0_11] : memref<8x128xf32, #tpu.memory_space<vmem>>, vector<8x128xf32>
    tpu.vector_store %arg6[%c0_10, %c0_11], %11 {strides = array<i32>} : memref<8x128xf32, #tpu.memory_space<vmem>>, vector<8x128xf32>,
    return
  }
  func.func @transform_0(%arg0: i32) -> (i32, i32) {
    %c0_i32 = arith.constant 0 : i32
    %c0_i32_0 = arith.constant 0 : i32
    return %arg0, %c0_i32 : i32, i32
  }
  func.func @transform_1(%arg0: i32) -> (i32, i32) {
    %c0_i32 = arith.constant 0 : i32
    %c0_i32_0 = arith.constant 0 : i32
    %c0_i32_1 = arith.constant 0 : i32
    return %c0_i32, %c0_i32_0 : i32, i32
  }
  func.func @transform_2(%arg0: i32) -> (i32, i32) {
    %c0_i32 = arith.constant 0 : i32
    %c0_i32_0 = arith.constant 0 : i32
    %c0_i32_1 = arith.constant 0 : i32
    return %c0_i32, %c0_i32_0 : i32, i32
  }
  func.func @transform_3(%arg0: i32) -> (i32, i32) {
    %c0_i32 = arith.constant 0 : i32
    %c0_i32_0 = arith.constant 0 : i32
    %c0_i32_1 = arith.constant 0 : i32
    return %c0_i32, %c0_i32_0 : i32, i32
  }
  func.func @transform_4(%arg0: i32) -> (i32, i32) {
    %c0_i32 = arith.constant 0 : i32
    %c0_i32_0 = arith.constant 0 : i32
    %c0_i32_1 = arith.constant 0 : i32
    return %c0_i32, %c0_i32_0 : i32, i32
  }
  func.func @transform_5(%arg0: i32) -> (i32, i32) {
    %c0_i32 = arith.constant 0 : i32
    %c0_i32_0 = arith.constant 0 : i32
    return %arg0, %c0_i32 : i32, i32
  }
}

</mosaic_0001>

<llo_original>
// kernel: tpu_custom_call.1
$region0: #{tpu_custom_call.1}
  #allocation0 [shape = 'u32[]', space=smem, size = 0x4, offset = 0x4, fixed_abs, tag = 'smem constant byte address 0x4 - core index']
  #allocation1 [shape = 'u32[144,128]{1,0:T(1,128)}', space=vmem, size = 0x12000, scoped, tag = 'internal scratch']
  %s0 = inlined_call_operand.hbm [shape: bf16[8,128], index: 0, kind: input, shape index: {}]
  %s1 = inlined_call_operand.hbm [shape: bf16[128,128], index: 1, kind: input, shape index: {}]
  %s2 = inlined_call_operand.vmem [shape: f32[1,128], index: 2, kind: input, shape index: {}]
  %s3 = inlined_call_operand.hbm [shape: bf16[128,128], index: 3, kind: input, shape index: {}]
  %s4 = inlined_call_operand.vmem [shape: f32[1,128], index: 4, kind: input, shape index: {}]
  %s5 = inlined_call_operand.hbm [shape: f32[8,128], index: 5, kind: output, shape index: {}]
  %s6 = sld [smem:[#allocation0]]
  $region42: #{tpu_custom_call.1} parent=0
    _
  %s8 = ssub.s32 1, %s6
  %s9 = scalar_select 0, %s8, %s6
  $region1: #{tpu_custom_call.1} parent=0
    #allocation2 [shape = 'u8[2048]{0}', space=vmem, size = 0x800, scoped, tag = 'input window, operand 0, single buffered']
    #allocation3 [shape = 's32[1]{0}', space=sflag, size = 0x4, scoped, tag = 'scoped memory for tpu_custom_call.1']
    #allocation4 [shape = 's32[1]{0}', space=sflag, size = 0x4, scoped, tag = 'scoped memory for tpu_custom_call.1']
    #allocation5 [shape = 'u8[32768]{0}', space=vmem, size = 0x8000, scoped, tag = 'input window, operand 1, single buffered']
    #allocation6 [shape = 's32[1]{0}', space=sflag, size = 0x4, scoped, tag = 'scoped memory for tpu_custom_call.1']
    #allocation7 [shape = 'u8[32768]{0}', space=vmem, size = 0x8000, scoped, tag = 'input window, operand 3, single buffered']
    #allocation8 [shape = 'u8[4096]{0}', space=vmem, size = 0x1000, scoped, tag = 'output window, operand 0, single buffered']
    %10 = vsyncpa [#allocation3], 0
    %11 = vsyncpa [#allocation6], 0
    %12 = vsyncpa [#allocation4], 0
    // Predicated region
    $region2: #{tpu_custom_call.1} parent=1 // pred_check
      _
    $region3: #{tpu_custom_call.1} parent=1 // pred_check_branch
      %14 = sbr.rel (0) target = $region5
    $region4: #{tpu_custom_call.1} parent=1 // pred_region
      %s16 = ssub.s32 64, 64
      %17 = vsyncadd [#allocation3], %s16
      %s19 = sshll.u32 [#allocation2], 4
      %s20 = int_to_ptr.vmem [resolvable:$true] %s19
      %22 = dma.hbm_to_vmem [thread:$0]  %s0, 64, %s20, [#allocation3]
    $region5: #{tpu_custom_call.1} parent=1 // pred_fallthru
      _
    // Predicated region
    $region6: #{tpu_custom_call.1} parent=1 // pred_check
      _
    $region7: #{tpu_custom_call.1} parent=1 // pred_check_branch
      %24 = sbr.rel (0) target = $region9
    $region8: #{tpu_custom_call.1} parent=1 // pred_region
      %s26 = ssub.s32 1024, 1024
      %27 = vsyncadd [#allocation6], %s26
      %s28 = sshll.u32 [#allocation5], 4
      %s29 = int_to_ptr.vmem [resolvable:$true] %s28
      %34 = dma.hbm_to_vmem [thread:$0]  %s1, 1024, %s29, [#allocation6], 64, 64, 4
    $region9: #{tpu_custom_call.1} parent=1 // pred_fallthru
      _
    // Predicated region
    $region10: #{tpu_custom_call.1} parent=1 // pred_check
      _
    $region11: #{tpu_custom_call.1} parent=1 // pred_check_branch
      %36 = sbr.rel (0) target = $region13
    $region12: #{tpu_custom_call.1} parent=1 // pred_region
      _
    $region13: #{tpu_custom_call.1} parent=1 // pred_fallthru
      _
    // Predicated region
    $region14: #{tpu_custom_call.1} parent=1 // pred_check
      _
    $region15: #{tpu_custom_call.1} parent=1 // pred_check_branch
      %38 = sbr.rel (0) target = $region17
    $region16: #{tpu_custom_call.1} parent=1 // pred_region
      %s40 = ssub.s32 1024, 1024
      %41 = vsyncadd [#allocation6], %s40
      %s42 = sshll.u32 [#allocation7], 4
      %s43 = int_to_ptr.vmem [resolvable:$true] %s42
      %48 = dma.hbm_to_vmem [thread:$0]  %s3, 1024, %s43, [#allocation6], 64, 64, 4
    $region17: #{tpu_custom_call.1} parent=1 // pred_fallthru
      _
    // Predicated region
    $region18: #{tpu_custom_call.1} parent=1 // pred_check
      _
    $region19: #{tpu_custom_call.1} parent=1 // pred_check_branch
      %50 = sbr.rel (0) target = $region21
    $region20: #{tpu_custom_call.1} parent=1 // pred_region
      _
    $region21: #{tpu_custom_call.1} parent=1 // pred_fallthru
      _
    // Predicated region
    $region22: #{tpu_custom_call.1} parent=1 // pred_check
      _
    $region23: #{tpu_custom_call.1} parent=1 // pred_check_branch
      %52 = sbr.rel (0) target = $region25
    $region24: #{tpu_custom_call.1} parent=1 // pred_region
      %53 = dma.done [#allocation3], 64
    $region25: #{tpu_custom_call.1} parent=1 // pred_fallthru
      _
    // Predicated region
    $region26: #{tpu_custom_call.1} parent=1 // pred_check
      _
    $region27: #{tpu_custom_call.1} parent=1 // pred_check_branch
      %55 = sbr.rel (0) target = $region29
    $region28: #{tpu_custom_call.1} parent=1 // pred_region
      %56 = dma.done [#allocation6], 1024
    $region29: #{tpu_custom_call.1} parent=1 // pred_fallthru
      _
    // Predicated region
    $region30: #{tpu_custom_call.1} parent=1 // pred_check
      _
    $region31: #{tpu_custom_call.1} parent=1 // pred_check_branch
      %58 = sbr.rel (0) target = $region33
    $region32: #{tpu_custom_call.1} parent=1 // pred_region
      %59 = dma.done [#allocation6], 1024
    $region33: #{tpu_custom_call.1} parent=1 // pred_fallthru
      _
    %v61 = vld [vmem:[#allocation2] sm:$0xf]
    %v62 = vld [vmem:[#allocation5] sm:$0xf]
    %v63 = vld [vmem:[#allocation5 + $0x4] sm:$0xf]
    %v64 = vld [vmem:[#allocation5 + $0x8] sm:$0xf]
    %v65 = vld [vmem:[#allocation5 + $0xc] sm:$0xf]
    %v66 = vld [vmem:[#allocation5 + $0x10] sm:$0xf]
    %v67 = vld [vmem:[#allocation5 + $0x14] sm:$0xf]
    %v68 = vld [vmem:[#allocation5 + $0x18] sm:$0xf]
    %v69 = vld [vmem:[#allocation5 + $0x1c] sm:$0xf]
    %v70 = vld [vmem:[#allocation5 + $0x20] sm:$0xf]
    %v71 = vld [vmem:[#allocation5 + $0x24] sm:$0xf]
    %v72 = vld [vmem:[#allocation5 + $0x28] sm:$0xf]
    %v73 = vld [vmem:[#allocation5 + $0x2c] sm:$0xf]
    %v74 = vld [vmem:[#allocation5 + $0x30] sm:$0xf]
    %v75 = vld [vmem:[#allocation5 + $0x34] sm:$0xf]
    %v76 = vld [vmem:[#allocation5 + $0x38] sm:$0xf]
    %v77 = vld [vmem:[#allocation5 + $0x3c] sm:$0xf]
    %v78 = vld [vmem:[%s2] sm:$0x1]
    %v80 = vlaneseq
    %v81 = vshrl.u32 %v80, 7
    %v82 = vsub.s32 0, %v81
    %v83 = vrot.slane %v78, %v82
    %v101 = vunpack.c.l.b16 %v62
    %v102 = vunpack.c.l.b16 %v63
    %v103 = vunpack.c.l.b16 %v64
    %v104 = vunpack.c.l.b16 %v65
    %v105 = vunpack.c.l.b16 %v66
    %v106 = vunpack.c.l.b16 %v67
    %v107 = vunpack.c.l.b16 %v68
    %v108 = vunpack.c.l.b16 %v69
    %v109 = vunpack.c.l.b16 %v70
    %v110 = vunpack.c.l.b16 %v71
    %v111 = vunpack.c.l.b16 %v72
    %v112 = vunpack.c.l.b16 %v73
    %v113 = vunpack.c.l.b16 %v74
    %v114 = vunpack.c.l.b16 %v75
    %v115 = vunpack.c.l.b16 %v76
    %v116 = vunpack.c.l.b16 %v77
    %v117 = vpack.c.b16 %v102, %v101
    %v118 = vpack.c.b16 %v104, %v103
    %v119 = vpack.c.b16 %v106, %v105
    %v120 = vpack.c.b16 %v108, %v107
    %v121 = vpack.c.b16 %v110, %v109
    %v122 = vpack.c.b16 %v112, %v111
    %v123 = vpack.c.b16 %v114, %v113
    %v124 = vpack.c.b16 %v116, %v115
    %133 = vmatprep.subr.bf16.mxu0 0
    %134 = vmatpush1.bf16.msra.mxu0 %v117
    %135 = vmatprep.subr.bf16.mxu0 0
    %136 = vmatpush1.bf16.msra.mxu0 %v118
    %137 = vmatprep.subr.bf16.mxu0 0
    %138 = vmatpush1.bf16.msra.mxu0 %v119
    %139 = vmatprep.subr.bf16.mxu0 0
    %140 = vmatpush1.bf16.msra.mxu0 %v120
    %141 = vmatprep.subr.bf16.mxu0 0
    %142 = vmatpush1.bf16.msra.mxu0 %v121
    %143 = vmatprep.subr.bf16.mxu0 0
    %144 = vmatpush1.bf16.msra.mxu0 %v122
    %145 = vmatprep.subr.bf16.mxu0 0
    %146 = vmatpush1.bf16.msra.mxu0 %v123
    %147 = vmatprep.subr.bf16.mxu0 0
    %148 = vmatpush1.bf16.msra.mxu0 %v124
    %149 = vmatprep.subr.bf16.mxu0 0
    %150 = vmatpush1.bf16.msra.mxu0 0
    %151 = vmatprep.subr.bf16.mxu0 0
    %152 = vmatpush1.bf16.msra.mxu0 0
    %153 = vmatprep.subr.bf16.mxu0 0
    %154 = vmatpush1.bf16.msra.mxu0 0
    %155 = vmatprep.subr.bf16.mxu0 0
    %156 = vmatpush1.bf16.msra.mxu0 0
    %157 = vmatprep.subr.bf16.mxu0 0
    %158 = vmatpush1.bf16.msra.mxu0 0
    %159 = vmatprep.subr.bf16.mxu0 0
    %160 = vmatpush1.bf16.msra.mxu0 0
    %161 = vmatprep.subr.bf16.mxu0 0
    %162 = vmatpush1.bf16.msra.mxu0 0
    %163 = vmatprep.subr.bf16.mxu0 0
    %164 = vmatpush1.bf16.msra.mxu0 0
    %165 = vmatprep.mubr.bf16.mxu0 0
    %166 = vmatmul.mubr.bf16.gmra.mrb[0].mxu0 %v61
    %v167 = vpop.f32.mrb[0].mxu0
    %v168 = vadd.f32 %v83, %v167
    %v169 = vpop.f32.mrb[0].mxu0
    %v170 = vpop.f32.mrb[0].mxu0
    %v171 = vpop.f32.mrb[0].mxu0
    %172 = vdwg.mxu0
    %v173 = vpack.c.bf16 %v168, %v168
    %v174 = vld [vmem:[#allocation7] sm:$0xf]
    %v175 = vld [vmem:[#allocation7 + $0x4] sm:$0xf]
    %v176 = vld [vmem:[#allocation7 + $0x8] sm:$0xf]
    %v177 = vld [vmem:[#allocation7 + $0xc] sm:$0xf]
    %v178 = vld [vmem:[#allocation7 + $0x10] sm:$0xf]
    %v179 = vld [vmem:[#allocation7 + $0x14] sm:$0xf]
    %v180 = vld [vmem:[#allocation7 + $0x18] sm:$0xf]
    %v181 = vld [vmem:[#allocation7 + $0x1c] sm:$0xf]
    %v182 = vld [vmem:[#allocation7 + $0x20] sm:$0xf]
    %v183 = vld [vmem:[#allocation7 + $0x24] sm:$0xf]
    %v184 = vld [vmem:[#allocation7 + $0x28] sm:$0xf]
    %v185 = vld [vmem:[#allocation7 + $0x2c] sm:$0xf]
    %v186 = vld [vmem:[#allocation7 + $0x30] sm:$0xf]
    %v187 = vld [vmem:[#allocation7 + $0x34] sm:$0xf]
    %v188 = vld [vmem:[#allocation7 + $0x38] sm:$0xf]
    %v189 = vld [vmem:[#allocation7 + $0x3c] sm:$0xf]
    %v190 = vld [vmem:[%s4] sm:$0x1]
    %v192 = vlaneseq
    %v193 = vshrl.u32 %v192, 7
    %v194 = vsub.s32 0, %v193
    %v195 = vrot.slane %v190, %v194
    %v213 = vunpack.c.l.b16 %v174
    %v214 = vunpack.c.l.b16 %v175
    %v215 = vunpack.c.l.b16 %v176
    %v216 = vunpack.c.l.b16 %v177
    %v217 = vunpack.c.l.b16 %v178
    %v218 = vunpack.c.l.b16 %v179
    %v219 = vunpack.c.l.b16 %v180
    %v220 = vunpack.c.l.b16 %v181
    %v221 = vunpack.c.l.b16 %v182
    %v222 = vunpack.c.l.b16 %v183
    %v223 = vunpack.c.l.b16 %v184
    %v224 = vunpack.c.l.b16 %v185
    %v225 = vunpack.c.l.b16 %v186
    %v226 = vunpack.c.l.b16 %v187
    %v227 = vunpack.c.l.b16 %v188
    %v228 = vunpack.c.l.b16 %v189
    %v229 = vpack.c.b16 %v214, %v213
    %v230 = vpack.c.b16 %v216, %v215
    %v231 = vpack.c.b16 %v218, %v217
    %v232 = vpack.c.b16 %v220, %v219
    %v233 = vpack.c.b16 %v222, %v221
    %v234 = vpack.c.b16 %v224, %v223
    %v235 = vpack.c.b16 %v226, %v225
    %v236 = vpack.c.b16 %v228, %v227
    %245 = vmatprep.subr.bf16.mxu0 0
    %246 = vmatpush1.bf16.msra.mxu0 %v229
    %247 = vmatprep.subr.bf16.mxu0 0
    %248 = vmatpush1.bf16.msra.mxu0 %v230
    %249 = vmatprep.subr.bf16.mxu0 0
    %250 = vmatpush1.bf16.msra.mxu0 %v231
    %251 = vmatprep.subr.bf16.mxu0 0
    %252 = vmatpush1.bf16.msra.mxu0 %v232
    %253 = vmatprep.subr.bf16.mxu0 0
    %254 = vmatpush1.bf16.msra.mxu0 %v233
    %255 = vmatprep.subr.bf16.mxu0 0
    %256 = vmatpush1.bf16.msra.mxu0 %v234
    %257 = vmatprep.subr.bf16.mxu0 0
    %258 = vmatpush1.bf16.msra.mxu0 %v235
    %259 = vmatprep.subr.bf16.mxu0 0
    %260 = vmatpush1.bf16.msra.mxu0 %v236
    %261 = vmatprep.subr.bf16.mxu0 0
    %262 = vmatpush1.bf16.msra.mxu0 0
    %263 = vmatprep.subr.bf16.mxu0 0
    %264 = vmatpush1.bf16.msra.mxu0 0
    %265 = vmatprep.subr.bf16.mxu0 0
    %266 = vmatpush1.bf16.msra.mxu0 0
    %267 = vmatprep.subr.bf16.mxu0 0
    %268 = vmatpush1.bf16.msra.mxu0 0
    %269 = vmatprep.subr.bf16.mxu0 0
    %270 = vmatpush1.bf16.msra.mxu0 0
    %271 = vmatprep.subr.bf16.mxu0 0
    %272 = vmatpush1.bf16.msra.mxu0 0
    %273 = vmatprep.subr.bf16.mxu0 0
    %274 = vmatpush1.bf16.msra.mxu0 0
    %275 = vmatprep.subr.bf16.mxu0 0
    %276 = vmatpush1.bf16.msra.mxu0 0
    %277 = vmatprep.mubr.bf16.mxu0 0
    %278 = vmatmul.mubr.bf16.gmra.mrb[0].mxu0 %v173
    %v279 = vpop.f32.mrb[0].mxu0
    %v280 = vadd.f32 %v195, %v279
    %v281 = vpop.f32.mrb[0].mxu0
    %v282 = vpop.f32.mrb[0].mxu0
    %v283 = vpop.f32.mrb[0].mxu0
    %284 = vdwg.mxu0
    %285 = vst [vmem:[#allocation8] sm:$0xff] %v280
    // Predicated region
    $region34: #{tpu_custom_call.1} parent=1 // pred_check
      _
    $region35: #{tpu_custom_call.1} parent=1 // pred_check_branch
      %287 = sbr.rel (0) target = $region37
    $region36: #{tpu_custom_call.1} parent=1 // pred_region
      %s289 = ssub.s32 128, 128
      %290 = vsyncadd [#allocation4], %s289
      %s292 = sshll.u32 [#allocation8], 4
      %s293 = int_to_ptr.vmem [resolvable:$true] %s292
      %295 = dma.vmem_to_hbm [thread:$0]  %s293, 128, %s5, [#allocation4]
    $region37: #{tpu_custom_call.1} parent=1 // pred_fallthru
      _
    // Predicated region
    $region38: #{tpu_custom_call.1} parent=1 // pred_check
      _
    $region39: #{tpu_custom_call.1} parent=1 // pred_check_branch
      %297 = sbr.rel (0) target = $region41
    $region40: #{tpu_custom_call.1} parent=1 // pred_region
      %298 = dma.done [#allocation4], 128
    $region41: #{tpu_custom_call.1} parent=1 // pred_fallthru
      _
    %299 = vsyncpa [#allocation3], 1
    %300 = vsyncpa [#allocation6], 1
    %301 = vsyncpa [#allocation4], 1

</llo_original>
